<compile_context>
chip_gen: v5e
topology: v5e:2x2
jax: 0.10.0
libtpu: 0.0.40
codegen_flags: <defaults>
</compile_context>

<pallas_src>
import functools
import math

import jax
import jax.numpy as jnp
from jax.experimental import pallas as pl
from jax.experimental.pallas import tpu as pltpu

_LANE = 128
_SUBLANE = 8


def _cdiv(a, b):
    return -(-a // b)


def _round_up(x, m):
    return _cdiv(x, m) * m


# -----------------------------------------------------------------------------
# One-time hardware / feature detection (cached at module level).
# -----------------------------------------------------------------------------
_VMEM_CAP = None
_PIPELINE_MODE_OK = None


def _vmem_capacity():
    """Physical VMEM per TensorCore (128 MiB on v5e/v6e, 64 MiB on v7x)."""
    global _VMEM_CAP
    if _VMEM_CAP is None:
        cap = None
        try:
            cap = getattr(pltpu.get_tpu_info(), "vmem_capacity_bytes", None)
        except Exception:
            cap = None
        _VMEM_CAP = int(cap) if cap else (64 << 20)  # conservative default (v7x)
    return _VMEM_CAP


def _pipeline_mode_supported():
    """One-time feature detection for BlockSpec(pipeline_mode=pl.Buffered(k)).

    Compiles/runs a tiny probe kernel exactly once; the real kernel is never
    wrapped in a try/except, so genuine errors stay visible."""
    global _PIPELINE_MODE_OK
    if _PIPELINE_MODE_OK is not None:
        return _PIPELINE_MODE_OK
    ok = hasattr(pl, "Buffered")
    if ok:
        try:
            def _probe(a_ref, b_ref, o_ref):
                o_ref[...] = a_ref[...] + b_ref[...]

            a = jnp.zeros((32, 128), jnp.float32)
            b = jnp.zeros((8, 128), jnp.float32)
            y = pl.pallas_call(
                _probe,
                out_shape=jax.ShapeDtypeStruct((32, 128), jnp.float32),
                grid=(4,),
                in_specs=[
                    pl.BlockSpec((8, 128), lambda i: (i, 0),
                                 pipeline_mode=pl.Buffered(3)),
                    pl.BlockSpec((8, 128), lambda i: (0, 0),
                                 pipeline_mode=pl.Buffered(1)),
                ],
                out_specs=pl.BlockSpec((8, 128), lambda i: (i, 0),
                                       pipeline_mode=pl.Buffered(3)),
            )(a, b)
            jax.block_until_ready(y)
        except Exception:
            ok = False
    _PIPELINE_MODE_OK = ok
    return ok


# -----------------------------------------------------------------------------
# Kernels
# -----------------------------------------------------------------------------
def _swish(v, approx):
    """v * sigmoid(v) on an f32 value.

    approx=True: exp (EUP) + approximate reciprocal (EUP) — no VPU divide.
    The clamp on the exponent keeps swish(v << 0) finite (== ~0)."""
    if approx:
        e = jnp.exp(jnp.minimum(-v, 80.0))
        return v * pl.reciprocal(1.0 + e, approx=True)
    return v * jax.nn.sigmoid(v)


def _resident_kernel(x_ref, w1t_ref, w2t_ref, o_ref, *, act, approx,
                     compute_dtype, rows_per_chunk):
    """Both weight matrices resident in VMEM; one grid axis over rows."""
    tm = x_ref.shape[0]
    w1 = w1t_ref[...]
    w2 = w2t_ref[...]

    def run_rows(r0, nrows):
        xb = x_ref[pl.ds(r0, nrows), :].astype(jnp.float32).astype(compute_dtype)
        h = jnp.dot(xb, w1, preferred_element_type=jnp.float32)
        if act:
            h = _swish(h, approx)
        y = jnp.dot(h.astype(compute_dtype), w2,
                    preferred_element_type=jnp.float32)
        if act:
            y = _swish(y, approx)
        o_ref[pl.ds(r0, nrows), :] = y.astype(o_ref.dtype)

    if rows_per_chunk >= tm:
        run_rows(0, tm)
    else:
        # Static row sub-chunking: matmul2 + swish of chunk c co-issues with
        # matmul1 of chunk c+1, and the f32 `h` live set is one chunk only.
        for c in range(tm // rows_per_chunk):
            run_rows(c * rows_per_chunk, rows_per_chunk)


def _cmid_tiled_kernel(x_ref, w1t_ref, w2t_ref, o_ref, acc_ref, *, act, approx,
                       compute_dtype):
    """Fallback for large channel counts: second grid axis tiles the hidden
    (Cmid) dimension; y accumulates in f32 VMEM scratch."""
    j = pl.program_id(1)

    @pl.when(j == 0)
    def _init():
        acc_ref[...] = jnp.zeros_like(acc_ref)

    xb = x_ref[...].astype(jnp.float32).astype(compute_dtype)
    h = jnp.dot(xb, w1t_ref[...], preferred_element_type=jnp.float32)
    if act:
        h = _swish(h, approx)
    acc_ref[...] += jnp.dot(h.astype(compute_dtype), w2t_ref[...],
                            preferred_element_type=jnp.float32)

    @pl.when(j == pl.num_programs(1) - 1)
    def _finish():
        y = acc_ref[...]
        if act:
            y = _swish(y, approx)
        o_ref[...] = y.astype(o_ref.dtype)


# -----------------------------------------------------------------------------
# Wrappers
# -----------------------------------------------------------------------------
def prepare_weights(w1, w2, *, compute_dtype=jnp.bfloat16, lane_multiple=_LANE):
    """One-time weight layout (hoist out of the hot path).

    torch-layout w1:(Cmid,Cin), w2:(Cout,Cmid) -> transposed to (in, out), cast
    to the MXU compute dtype, Cmid zero-padded to a lane multiple.  The padding
    is mathematically exact (extra h columns are 0, swish(0)==0).  Cin / Cout
    are left unpadded so x and the output need no wrapper-side pad/slice
    copies.  On v6e/v7x, lane_multiple=256 better fills the 256x256 MXU for
    compute-bound channel counts."""
    cmid, cin = w1.shape
    cout, cmid2 = w2.shape
    assert cmid == cmid2
    cmid_p = _round_up(cmid, lane_multiple)
    w1t = jnp.zeros((cin, cmid_p), compute_dtype).at[:, :cmid].set(
        jnp.asarray(w1).T.astype(jnp.float32).astype(compute_dtype))
    w2t = jnp.zeros((cmid_p, cout), compute_dtype).at[:cmid, :].set(
        jnp.asarray(w2).T.astype(jnp.float32).astype(compute_dtype))
    return w1t, w2t, cout


def two_layer_linear_prepared(x, w1t, w2t, *, act=False, tm=512,
                              out_dtype=jnp.float32, use_tiled=None):
    """Hot path.  x:(N, Cin) (any float dtype); w1t/w2t from prepare_weights()."""
    N, cin = x.shape
    cin_w, cmid_p = w1t.shape
    cmid_p2, cout = w2t.shape
    assert cin == cin_w and cmid_p == cmid_p2
    compute_dtype = w1t.dtype
    approx = jnp.dtype(compute_dtype) != jnp.dtype(jnp.float32)
    cbytes = jnp.dtype(compute_dtype).itemsize
    xbytes = jnp.dtype(x.dtype).itemsize
    obytes = jnp.dtype(out_dtype).itemsize

    cap = _vmem_capacity()
    pipe_ok = _pipeline_mode_supported()

    # Row tiling: evenly sized tiles (<8 wasted rows per tile) and a ragged
    # last grid step instead of padding N (no extra HBM round trip).
    tm_max = max(_SUBLANE, _round_up(min(tm, max(N, 1)), _SUBLANE))
    tm = _round_up(_cdiv(N, _cdiv(N, tm_max)), _SUBLANE)
    grid_rows = _cdiv(N, tm)

    def _spec(shape, imap, bufs=None):
        if bufs is not None and pipe_ok:
            return pl.BlockSpec(shape, imap, pipeline_mode=pl.Buffered(bufs))
        return pl.BlockSpec(shape, imap)

    # Choose resident-weight vs Cmid-tiled scheme from the VMEM footprint.
    rows_per_chunk = next((c for c in (256, 128) if c < tm and tm % c == 0), tm)
    wbufs = 1 if pipe_ok else 2
    stream_bufs = 3 if (pipe_ok and grid_rows >= 3) else None   # None -> default 2
    n_sbuf = 3 if stream_bufs else 2
    resident_need = (n_sbuf * tm * cin * xbytes
                     + n_sbuf * tm * cout * obytes
                     + wbufs * (cin * cmid_p + cmid_p * cout) * cbytes
                     + rows_per_chunk * (cmid_p + cout) * 4)
    if use_tiled is None:
        use_tiled = resident_need > int(0.45 * cap)   # generation-aware threshold

    if not use_tiled:
        kernel = functools.partial(_resident_kernel, act=act, approx=approx,
                                   compute_dtype=compute_dtype,
                                   rows_per_chunk=rows_per_chunk)
        in_specs = [
            _spec((tm, cin), lambda i: (i, 0), bufs=stream_bufs),     # x rows
            _spec((cin, cmid_p), lambda i: (0, 0), bufs=1),           # W1^T
            _spec((cmid_p, cout), lambda i: (0, 0), bufs=1),          # W2^T
        ]
        out_specs = _spec((tm, cout), lambda i: (i, 0), bufs=stream_bufs)
        grid = (grid_rows,)
        dims = ("parallel",)
        scratch = ()
        vmem_need = resident_need
    else:
        # Tile the hidden dim; tkm must divide cmid_p exactly (no OOB garbage
        # can enter the accumulation).
        tkm = next(c for c in (512, 384, 256, 128) if cmid_p % c == 0)
        kernel = functools.partial(_cmid_tiled_kernel, act=act, approx=approx,
                                   compute_dtype=compute_dtype)
        in_specs = [
            pl.BlockSpec((tm, cin), lambda i, j: (i, 0)),
            pl.BlockSpec((cin, tkm), lambda i, j: (0, j)),
            pl.BlockSpec((tkm, cout), lambda i, j: (j, 0)),
        ]
        out_specs = pl.BlockSpec((tm, cout), lambda i, j: (i, 0))
        grid = (grid_rows, cmid_p // tkm)
        dims = ("parallel", "arbitrary")
        scratch = (pltpu.VMEM((tm, cout), jnp.float32),)
        vmem_need = (2 * tm * cin * xbytes + 2 * tm * cout * obytes
                     + 2 * (cin * tkm + tkm * cout) * cbytes
                     + tm * cout * 4 + tm * tkm * 4)

    # VMEM request clamped to physical capacity (64 MiB on v7x => <= 56 MiB);
    # the 100 MiB ceiling only ever applies on v5e/v6e (128 MiB VMEM).
    ceiling = min(100 << 20, cap - (8 << 20))
    vmem_limit = int(min(max(vmem_need * 3 // 2 + (4 << 20), 16 << 20), ceiling))

    flops = 2 * N * cin * cmid_p + 2 * N * cmid_p * cout
    transc = N * (cmid_p + cout) if act else 0
    bytes_acc = (N * cin * xbytes + (cin * cmid_p + cmid_p * cout) * cbytes
                 + N * cout * obytes)

    return pl.pallas_call(
        kernel,
        out_shape=jax.ShapeDtypeStruct((N, cout), out_dtype),
        grid_spec=pltpu.PrefetchScalarGridSpec(
            num_scalar_prefetch=0,
            grid=grid,
            in_specs=in_specs,
            out_specs=out_specs,
            scratch_shapes=scratch,
        ),
        compiler_params=pltpu.CompilerParams(
            # "parallel" on the row axis lets Mosaic shard rows across the two
            # v7x TensorCores; pltpu.CORE_PARALLEL can be substituted here once
            # verified on the target toolchain (no-op on single-TC v5e/v6e).
            dimension_semantics=dims,
            vmem_limit_bytes=vmem_limit,
        ),
        cost_estimate=pl.CostEstimate(flops=int(flops),
                                      transcendentals=int(transc),
                                      bytes_accessed=int(bytes_acc)),
    )(x, w1t, w2t)


def two_layer_linear(x, w1, w2, *, act=False, tm=512,
                     compute_dtype=jnp.bfloat16, out_dtype=jnp.float32):
    """Convenience wrapper taking torch-layout weights.  For repeated calls,
    hoist prepare_weights() and call two_layer_linear_prepared directly."""
    w1t, w2t, _ = prepare_weights(w1, w2, compute_dtype=compute_dtype)
    return two_layer_linear_prepared(x, w1t, w2t, act=act, tm=tm,
                                     out_dtype=out_dtype)


def glorot(key, out_ch, in_ch):
    # PyG inits.glorot: uniform(-a, a) with a = sqrt(6 / (fan_in + fan_out))
    a = math.sqrt(6.0 / (in_ch + out_ch))
    return jax.random.uniform(key, (out_ch, in_ch), jnp.float32, -a, a)


if __name__ == "__main__":
    key = jax.random.PRNGKey(0)
    k_x, k_w1, k_w2 = jax.random.split(key, 3)

    N, IN_CH, MID_CH, OUT_CH = 8, 32, 64, 32
    ACT = True  # exercise the swish path; False is the module's default config

    x = jax.random.normal(k_x, (N, IN_CH), jnp.float32)
    w1 = glorot(k_w1, MID_CH, IN_CH)   # (out, in) like torch
    w2 = glorot(k_w2, OUT_CH, MID_CH)

    # Pure-JAX f32 reference of the exact PyTorch semantics.
    h_ref = x.astype(jnp.float32) @ w1.T
    if ACT:
        h_ref = h_ref * jax.nn.sigmoid(h_ref)
    y_ref = h_ref @ w2.T
    if ACT:
        y_ref = y_ref * jax.nn.sigmoid(y_ref)

    # 1) Hot path: bf16 MXU operands, f32 accumulation, resident weights,
    #    EUP-approx swish -> bf16-level tolerance.
    w1t, w2t, _ = prepare_weights(w1, w2)
    out = jax.block_until_ready(two_layer_linear_prepared(x, w1t, w2t, act=ACT))
    assert out.shape == (N, OUT_CH)
    assert out.dtype == jnp.float32
    assert jnp.allclose(out, y_ref, atol=2e-2, rtol=2e-2)

    # 2) Exact-numerics path (f32 operands, exact sigmoid).
    out_f32 = jax.block_until_ready(
        two_layer_linear(x, w1, w2, act=ACT, compute_dtype=jnp.float32))
    assert jnp.allclose(out_f32, y_ref, atol=1e-5, rtol=1e-5)

    # 3) Exercise the Cmid-tiled fallback path (auto-selected when resident
    #    weights would exceed ~45% of VMEM, e.g. large channels on v7x).
    w1t_f, w2t_f, _ = prepare_weights(w1, w2, compute_dtype=jnp.float32)
    out_tiled = jax.block_until_ready(
        two_layer_linear_prepared(x, w1t_f, w2t_f, act=ACT, use_tiled=True))
    assert jnp.allclose(out_tiled, y_ref, atol=1e-5, rtol=1e-5)

    print("KERNEL_OK")
</pallas_src>

<mosaic_0001>
module attributes {stable_mosaic.version = 11 : i64} {
  func.func @_resident_kernel(%arg0: i32, %arg1: memref<8x32xf32, #tpu.memory_space<vmem>>, %arg2: memref<32x128xbf16, #tpu.memory_space<vmem>>, %arg3: memref<128x32xbf16, #tpu.memory_space<vmem>>, %arg4: memref<8x32xf32, #tpu.memory_space<vmem>>) attributes {dimension_semantics = [#tpu.dimension_semantics<parallel>], iteration_bounds = array<i64: 1>, scalar_prefetch = 0 : i64, scratch_operands = 0 : i64, tpu.core_type = #tpu.core_type<tc>, window_params = [{transform_indices = @transform_0, window_bounds = array<i64: 8, 32>}, {pipeline_mode = #tpu.pipeline_mode<synchronous>, transform_indices = @transform_1, window_bounds = array<i64: 32, 128>}, {pipeline_mode = #tpu.pipeline_mode<synchronous>, transform_indices = @transform_2, window_bounds = array<i64: 128, 32>}, {transform_indices = @transform_3, window_bounds = array<i64: 8, 32>}]} {
    %c0 = arith.constant 0 : index
    %c0_0 = arith.constant 0 : index
    %0 = vector.load %arg2[%c0, %c0_0] : memref<32x128xbf16, #tpu.memory_space<vmem>>, vector<32x128xbf16>
    %c0_1 = arith.constant 0 : index
    %c0_2 = arith.constant 0 : index
    %1 = vector.load %arg3[%c0_1, %c0_2] : memref<128x32xbf16, #tpu.memory_space<vmem>>, vector<128x32xbf16>
    %c0_3 = arith.constant 0 : index
    %c0_4 = arith.constant 0 : index
    %2 = vector.load %arg1[%c0_3, %c0_4] : memref<8x32xf32, #tpu.memory_space<vmem>>, vector<8x32xf32>
    %3 = arith.truncf %2 : vector<8x32xf32> to vector<8x32xbf16>
    %cst = arith.constant dense<0.000000e+00> : vector<8x128xf32>
    %4 = tpu.matmul %3, %0, %cst {dimension_numbers = #tpu.dot_dimension_numbers<[1], [0], [0], [1], [0, 0, 1, 1], [], []>} : vector<8x32xbf16>, vector<32x128xbf16>, vector<8x128xf32> -> vector<8x128xf32>
    %cst_5 = arith.constant 0.000000e+00 : f32
    %5 = vector.broadcast %cst_5 : f32 to vector<8x128xf32>
    %6 = arith.subf %5, %4 : vector<8x128xf32>
    %cst_6 = arith.constant 8.000000e+01 : f32
    %7 = vector.broadcast %cst_6 : f32 to vector<8x128xf32>
    %8 = arith.minimumf %6, %7 : vector<8x128xf32>
    %9 = math.exp %8 : vector<8x128xf32>
    %cst_7 = arith.constant 1.000000e+00 : f32
    %10 = vector.broadcast %cst_7 : f32 to vector<8x128xf32>
    %11 = arith.addf %10, %9 : vector<8x128xf32>
    %12 = tpu.reciprocal %11 {approx = true} : vector<8x128xf32> -> vector<8x128xf32>
    %13 = arith.mulf %4, %12 : vector<8x128xf32>
    %14 = arith.truncf %13 : vector<8x128xf32> to vector<8x128xbf16>
    %cst_8 = arith.constant dense<0.000000e+00> : vector<8x32xf32>
    %15 = tpu.matmul %14, %1, %cst_8 {dimension_numbers = #tpu.dot_dimension_numbers<[1], [0], [0], [1], [0, 0, 1, 1], [], []>} : vector<8x128xbf16>, vector<128x32xbf16>, vector<8x32xf32> -> vector<8x32xf32>
    %cst_9 = arith.constant 0.000000e+00 : f32
    %16 = vector.broadcast %cst_9 : f32 to vector<8x32xf32>
    %17 = arith.subf %16, %15 : vector<8x32xf32>
    %cst_10 = arith.constant 8.000000e+01 : f32
    %18 = vector.broadcast %cst_10 : f32 to vector<8x32xf32>
    %19 = arith.minimumf %17, %18 : vector<8x32xf32>
    %20 = math.exp %19 : vector<8x32xf32>
    %cst_11 = arith.constant 1.000000e+00 : f32
    %21 = vector.broadcast %cst_11 : f32 to vector<8x32xf32>
    %22 = arith.addf %21, %20 : vector<8x32xf32>
    %23 = tpu.reciprocal %22 {approx = true} : vector<8x32xf32> -> vector<8x32xf32>
    %24 = arith.mulf %15, %23 : vector<8x32xf32>
    %c0_12 = arith.constant 0 : index
    %c0_13 = arith.constant 0 : index
    %25 = vector.load %arg4[%c0_12, %c0_13] : memref<8x32xf32, #tpu.memory_space<vmem>>, vector<8x32xf32>
    tpu.vector_store %arg4[%c0_12, %c0_13], %24 {strides = array<i32>} : memref<8x32xf32, #tpu.memory_space<vmem>>, vector<8x32xf32>,
    return
  }
  func.func @transform_0(%arg0: i32) -> (i32, i32) {
    %c0_i32 = arith.constant 0 : i32
    %c0_i32_0 = arith.constant 0 : i32
    return %arg0, %c0_i32 : i32, i32
  }
  func.func @transform_1(%arg0: i32) -> (i32, i32) {
    %c0_i32 = arith.constant 0 : i32
    %c0_i32_0 = arith.constant 0 : i32
    %c0_i32_1 = arith.constant 0 : i32
    return %c0_i32, %c0_i32_0 : i32, i32
  }
  func.func @transform_2(%arg0: i32) -> (i32, i32) {
    %c0_i32 = arith.constant 0 : i32
    %c0_i32_0 = arith.constant 0 : i32
    %c0_i32_1 = arith.constant 0 : i32
    return %c0_i32, %c0_i32_0 : i32, i32
  }
  func.func @transform_3(%arg0: i32) -> (i32, i32) {
    %c0_i32 = arith.constant 0 : i32
    %c0_i32_0 = arith.constant 0 : i32
    return %arg0, %c0_i32 : i32, i32
  }
}

</mosaic_0001>

<llo_original>
// kernel: tpu_custom_call.1
$region0: #{tpu_custom_call.1}
  #allocation0 [shape = 'u32[]', space=smem, size = 0x4, offset = 0x4, fixed_abs, tag = 'smem constant byte address 0x4 - core index']
  #allocation1 [shape = 'u32[72,128]{1,0:T(1,128)}', space=vmem, size = 0x9000, scoped, tag = 'internal scratch']
  %s0 = inlined_call_operand.vmem [shape: f32[8,32], index: 0, kind: input, shape index: {}]
  %s1 = inlined_call_operand.vmem [shape: bf16[32,128], index: 1, kind: input, shape index: {}]
  %s2 = inlined_call_operand.vmem [shape: bf16[128,32], index: 2, kind: input, shape index: {}]
  %s3 = inlined_call_operand.hbm [shape: f32[8,32], index: 3, kind: output, shape index: {}]
  %s4 = sld [smem:[#allocation0]]
  $region22: #{tpu_custom_call.1} parent=0
    _
  %s6 = ssub.s32 1, %s4
  %s7 = scalar_select 0, %s6, %s4
  $region1: #{tpu_custom_call.1} parent=0
    #allocation2 [shape = 'u8[4096]{0}', space=vmem, size = 0x1000, scoped, tag = 'output window, operand 0, single buffered']
    #allocation3 [shape = 's32[1]{0}', space=sflag, size = 0x4, scoped, tag = 'scoped memory for tpu_custom_call.1']
    %8 = vsyncpa [#allocation3], 0
    // Predicated region
    $region2: #{tpu_custom_call.1} parent=1 // pred_check
      _
    $region3: #{tpu_custom_call.1} parent=1 // pred_check_branch
      %10 = sbr.rel (0) target = $region5
    $region4: #{tpu_custom_call.1} parent=1 // pred_region
      _
    $region5: #{tpu_custom_call.1} parent=1 // pred_fallthru
      _
    // Predicated region
    $region6: #{tpu_custom_call.1} parent=1 // pred_check
      _
    $region7: #{tpu_custom_call.1} parent=1 // pred_check_branch
      %12 = sbr.rel (0) target = $region9
    $region8: #{tpu_custom_call.1} parent=1 // pred_region
      _
    $region9: #{tpu_custom_call.1} parent=1 // pred_fallthru
      _
    // Predicated region
    $region10: #{tpu_custom_call.1} parent=1 // pred_check
      _
    $region11: #{tpu_custom_call.1} parent=1 // pred_check_branch
      %14 = sbr.rel (0) target = $region13
    $region12: #{tpu_custom_call.1} parent=1 // pred_region
      _
    $region13: #{tpu_custom_call.1} parent=1 // pred_fallthru
      _
    %v16 = vld [vmem:[%s1] sm:$0xf]
    %v17 = vld [vmem:[%s1 + $0x4] sm:$0xf]
    %v18 = vld [vmem:[%s1 + $0x8] sm:$0xf]
    %v19 = vld [vmem:[%s1 + $0xc] sm:$0xf]
    %v20 = vld [vmem:[%s2] sm:$0xf]
    %v21 = vld [vmem:[%s2 + $0x4] sm:$0xf]
    %v22 = vld [vmem:[%s2 + $0x8] sm:$0xf]
    %v23 = vld [vmem:[%s2 + $0xc] sm:$0xf]
    %v24 = vld [vmem:[%s2 + $0x10] sm:$0xf]
    %v25 = vld [vmem:[%s2 + $0x14] sm:$0xf]
    %v26 = vld [vmem:[%s2 + $0x18] sm:$0xf]
    %v27 = vld [vmem:[%s2 + $0x1c] sm:$0xf]
    %v28 = vld [vmem:[%s2 + $0x20] sm:$0xf]
    %v29 = vld [vmem:[%s2 + $0x24] sm:$0xf]
    %v30 = vld [vmem:[%s2 + $0x28] sm:$0xf]
    %v31 = vld [vmem:[%s2 + $0x2c] sm:$0xf]
    %v32 = vld [vmem:[%s2 + $0x30] sm:$0xf]
    %v33 = vld [vmem:[%s2 + $0x34] sm:$0xf]
    %v34 = vld [vmem:[%s2 + $0x38] sm:$0xf]
    %v35 = vld [vmem:[%s2 + $0x3c] sm:$0xf]
    %v36 = vld [vmem:[%s0] sm:$0xff]
    %v37 = vpack.c.bf16 %v36, %v36
    %v42 = vunpack.c.l.b16 %v16
    %v43 = vunpack.c.l.b16 %v17
    %v44 = vunpack.c.l.b16 %v18
    %v45 = vunpack.c.l.b16 %v19
    %v46 = vpack.c.b16 %v43, %v42
    %v47 = vpack.c.b16 %v45, %v44
    %vm50 = vcmask 261120
    %v52 = vsel %vm50, %v37, 0
    %54 = vmatpush.bf16.msra.mxu0 0
    %55 = vmatpush.bf16.msra.mxu0 0
    %56 = vmatpush.bf16.msra.mxu0 0
    %57 = vmatpush.bf16.msra.mxu0 0
    %58 = vmatpush.bf16.msra.mxu0 0
    %59 = vmatpush.bf16.msra.mxu0 0
    %60 = vmatpush.bf16.msra.mxu0 %v47
    %61 = vmatpush.bf16.msra.mxu0 %v46
    %62 = vmatmul.bf16.gmra.mxu0 %v52
    %v63 = vpop.f32.mrf.mxu0
    %v64 = vadd.f32 0.0, %v63
    %v65 = vpop.f32.mrf.mxu0
    %66 = vdwg.mxu0
    %v67 = vsub.f32 0.0, %v64
    %v68 = vmin.f32 %v67, 80.0
    %v69 = vmul.f32 %v68, 1.442695
    %v70 = vpow.pop %v69
    %v71 = vadd.f32 %v70, 1.0
    %v72 = vrcp.pop %v71
    %v73 = vmul.f32 %v64, %v72
    %v74 = vpack.c.bf16 %v73, %v73
    %v91 = vunpack.c.l.b16 %v20
    %v92 = vunpack.c.l.b16 %v21
    %v93 = vunpack.c.l.b16 %v22
    %v94 = vunpack.c.l.b16 %v23
    %v95 = vunpack.c.l.b16 %v24
    %v96 = vunpack.c.l.b16 %v25
    %v97 = vunpack.c.l.b16 %v26
    %v98 = vunpack.c.l.b16 %v27
    %v99 = vunpack.c.l.b16 %v28
    %v100 = vunpack.c.l.b16 %v29
    %v101 = vunpack.c.l.b16 %v30
    %v102 = vunpack.c.l.b16 %v31
    %v103 = vunpack.c.l.b16 %v32
    %v104 = vunpack.c.l.b16 %v33
    %v105 = vunpack.c.l.b16 %v34
    %v106 = vunpack.c.l.b16 %v35
    %v107 = vpack.c.b16 %v92, %v91
    %v108 = vpack.c.b16 %v94, %v93
    %v109 = vpack.c.b16 %v96, %v95
    %v110 = vpack.c.b16 %v98, %v97
    %v111 = vpack.c.b16 %v100, %v99
    %v112 = vpack.c.b16 %v102, %v101
    %v113 = vpack.c.b16 %v104, %v103
    %v114 = vpack.c.b16 %v106, %v105
    %123 = vmatpush.bf16.msra.mxu0 %v114
    %124 = vmatpush.bf16.msra.mxu0 %v113
    %125 = vmatpush.bf16.msra.mxu0 %v112
    %126 = vmatpush.bf16.msra.mxu0 %v111
    %127 = vmatpush.bf16.msra.mxu0 %v110
    %128 = vmatpush.bf16.msra.mxu0 %v109
    %129 = vmatpush.bf16.msra.mxu0 %v108
    %130 = vmatpush.bf16.msra.mxu0 %v107
    %131 = vmatmul.bf16.gmra.mxu0 %v74
    %v132 = vpop.f32.mrf.mxu0
    %v133 = vadd.f32 0.0, %v132
    %v134 = vpop.f32.mrf.mxu0
    %135 = vdwg.mxu0
    %v136 = vsub.f32 0.0, %v133
    %v137 = vmin.f32 %v136, 80.0
    %v138 = vmul.f32 %v137, 1.442695
    %v139 = vpow.pop %v138
    %v140 = vadd.f32 %v139, 1.0
    %v141 = vrcp.pop %v140
    %v142 = vmul.f32 %v133, %v141
    %143 = vst.msk [vmem:[#allocation2] sm:$0xff] %vm50, %v142
    // Predicated region
    $region14: #{tpu_custom_call.1} parent=1 // pred_check
      _
    $region15: #{tpu_custom_call.1} parent=1 // pred_check_branch
      %145 = sbr.rel (0) target = $region17
    $region16: #{tpu_custom_call.1} parent=1 // pred_region
      %147 = vsyncadd [#allocation3], 0
      %s149 = sshll.u32 [#allocation2], 4
      %s150 = int_to_ptr.vmem [resolvable:$true] %s149
      %s151 = sshll.u32 %s3, 4
      %s152 = int_to_ptr.hbm [resolvable:$true] %s151
      %154 = dma.vmem_to_hbm [thread:$0]  %s150, 128, %s152, [#allocation3]
    $region17: #{tpu_custom_call.1} parent=1 // pred_fallthru
      _
    // Predicated region
    $region18: #{tpu_custom_call.1} parent=1 // pred_check
      _
    $region19: #{tpu_custom_call.1} parent=1 // pred_check_branch
      %156 = sbr.rel (0) target = $region21
    $region20: #{tpu_custom_call.1} parent=1 // pred_region
      %158 = dma.done [#allocation3], 128
    $region21: #{tpu_custom_call.1} parent=1 // pred_fallthru
      _
    %159 = vsyncpa [#allocation3], 1

</llo_original>
